<compile_context>
chip_gen: v7x
topology: tpu7x:2x2x1
jax: 0.10.0
libtpu: 0.0.40
codegen_flags: <defaults>
</compile_context>

<pallas_src>
import numpy as np
import jax
import jax.numpy as jnp
from jax.experimental import pallas as pl

LANE = 128
SUBLANE = 8


def _round_up(x, m):
    return (x + m - 1) // m * m


def _full_spec(shape):
    # Block == full array (everything fits comfortably in VMEM at these sizes).
    return pl.BlockSpec(shape, lambda: (0,) * len(shape))


def stacked_rnn_kernel(x_ref, h0_ref, wx_ref, wh_ref, b_ref, o_ref, hn_ref):
    """Fused forward over the whole stack (static unrolled layer loop).

    x_ref  : (B_pad, P)      padded input
    h0_ref : (S, B_pad, P)   padded initial hidden states
    wx_ref : (S, P, 2P)      packed input weights   [Wxh | Wxo] per layer
    wh_ref : (S, P, 2P)      packed hidden weights  [Whh | Who] per layer
    b_ref  : (S, 1, 2P)      packed biases          [bh  | bo ] per layer
    o_ref  : (B_pad, P)      padded final output
    hn_ref : (S, B_pad, P)   padded new hidden states
    """
    S = h0_ref.shape[0]
    P = x_ref.shape[1]
    wdt = wx_ref.dtype  # weights may be bf16; activations/accum stay f32

    o = x_ref[...]
    for layer in range(S):  # stack_size is small & static -> unrolled
        # Two accumulating lane-dense MXU dots per layer; no concat scratch.
        z = (jnp.dot(o.astype(wdt), wx_ref[layer],
                     preferred_element_type=jnp.float32)
             + jnp.dot(h0_ref[layer].astype(wdt), wh_ref[layer],
                       preferred_element_type=jnp.float32)
             + b_ref[layer])
        hn_ref[layer] = jnp.tanh(z[:, :P]).astype(hn_ref.dtype)
        o = z[:, P:]  # output slab of this layer feeds the next layer
    o_ref[...] = o.astype(o_ref.dtype)


def pack_stacked_params(params, weight_dtype=jnp.float32):
    """Host-side (numpy) packing of per-layer Linears into lane-dense fused mats.

    Returns (wx (S,P,2P), wh (S,P,2P), b (S,1,2P), P).  Padded rows/cols are
    zero, so padded lanes carry exact zeros through every layer.  Called ONCE,
    outside the forward path.
    """
    S = len(params)
    max_feat = 0
    for p in params:
        max_feat = max(max_feat, p["wxh"].shape[0], p["wxh"].shape[1],
                       p["whh"].shape[0], p["wxo"].shape[1])
    P = _round_up(max_feat, LANE)

    wx = np.zeros((S, P, 2 * P), np.float32)
    wh = np.zeros((S, P, 2 * P), np.float32)
    b = np.zeros((S, 1, 2 * P), np.float32)
    for l, p in enumerate(params):
        in_l, hid = p["wxh"].shape
        out_l = p["wxo"].shape[1]
        wx[l, :in_l, :hid] = np.asarray(p["wxh"])
        wx[l, :in_l, P:P + out_l] = np.asarray(p["wxo"])
        wh[l, :hid, :hid] = np.asarray(p["whh"])
        wh[l, :hid, P:P + out_l] = np.asarray(p["who"])
        b[l, 0, :hid] = np.asarray(p["bh"][0])
        b[l, 0, P:P + out_l] = np.asarray(p["bo"][0])
    return (jnp.asarray(wx, weight_dtype), jnp.asarray(wh, weight_dtype),
            jnp.asarray(b, jnp.float32), P)


def make_stacked_rnn_forward(params, weight_dtype=jnp.float32):
    """Build a jitted forward mirroring StackedRNN.forward.

    Packing happens once here; the returned closure only pads activations,
    calls the fused kernel and slices the results.
    """
    S = len(params)
    hidden_size = params[0]["whh"].shape[0]
    output_size = params[-1]["wxo"].shape[1]
    wx, wh, b, P = pack_stacked_params(params, weight_dtype)
    wbytes = int(wx.size * wx.dtype.itemsize + wh.size * wh.dtype.itemsize
                 + b.size * b.dtype.itemsize)

    @jax.jit
    def forward(x, h=None):
        batch, in_size = x.shape
        if h is None:
            h = jnp.zeros((S, batch, hidden_size), x.dtype)
        B_pad = _round_up(max(batch, SUBLANE), SUBLANE)

        x_pad = jnp.pad(x.astype(jnp.float32),
                        ((0, B_pad - batch), (0, P - in_size)))
        h_pad = jnp.pad(h.astype(jnp.float32),
                        ((0, 0), (0, B_pad - batch), (0, P - hidden_size)))

        cost = pl.CostEstimate(
            flops=S * 2 * (2 * B_pad * P * (2 * P)),      # two dots per layer
            transcendentals=S * B_pad * P,                 # tanh
            bytes_accessed=wbytes + 4 * (x_pad.size + 2 * h_pad.size + B_pad * P),
        )

        o_pad, hn_pad = pl.pallas_call(
            stacked_rnn_kernel,
            out_shape=(jax.ShapeDtypeStruct((B_pad, P), jnp.float32),
                       jax.ShapeDtypeStruct((S, B_pad, P), jnp.float32)),
            in_specs=[_full_spec((B_pad, P)),
                      _full_spec((S, B_pad, P)),
                      _full_spec((S, P, 2 * P)),
                      _full_spec((S, P, 2 * P)),
                      _full_spec((S, 1, 2 * P))],
            out_specs=(_full_spec((B_pad, P)),
                       _full_spec((S, B_pad, P))),
            cost_estimate=cost,
        )(x_pad, h_pad, wx, wh, b)

        return (o_pad[:batch, :output_size].astype(x.dtype),
                hn_pad[:, :batch, :hidden_size].astype(x.dtype))

    return forward


def init_stacked_rnn_params(key, input_size, hidden_size, output_size, stack_size=3):
    """Deterministic init (PyTorch-Linear-style uniform(-1/sqrt(fan_in), +)).

    Weights stored as (in_features, out_features) so y = x @ W + b."""
    layer_sizes = [(input_size, hidden_size, hidden_size)]
    for _ in range(stack_size - 2):
        layer_sizes.append((hidden_size, hidden_size, hidden_size))
    layer_sizes.append((hidden_size, hidden_size, output_size))

    params = []
    for (in_sz, hid_sz, out_sz) in layer_sizes:
        key, *ks = jax.random.split(key, 7)
        fan_in = in_sz + hid_sz
        bound = 1.0 / jnp.sqrt(fan_in)
        params.append(dict(
            wxh=jax.random.uniform(ks[0], (in_sz, hid_sz), jnp.float32, -bound, bound),
            whh=jax.random.uniform(ks[1], (hid_sz, hid_sz), jnp.float32, -bound, bound),
            bh=jax.random.uniform(ks[2], (1, hid_sz), jnp.float32, -bound, bound),
            wxo=jax.random.uniform(ks[3], (in_sz, out_sz), jnp.float32, -bound, bound),
            who=jax.random.uniform(ks[4], (hid_sz, out_sz), jnp.float32, -bound, bound),
            bo=jax.random.uniform(ks[5], (1, out_sz), jnp.float32, -bound, bound),
        ))
    return params


def reference_forward(params, x, h=None):
    """Pure-JAX reference for correctness checking."""
    S = len(params)
    batch = x.shape[0]
    hidden_size = params[0]["whh"].shape[0]
    if h is None:
        h = jnp.zeros((S, batch, hidden_size), x.dtype)
    o = x
    h_new = []
    for layer, p in enumerate(params):
        hid = jnp.tanh(o @ p["wxh"] + h[layer] @ p["whh"] + p["bh"])
        o = o @ p["wxo"] + h[layer] @ p["who"] + p["bo"]
        h_new.append(hid)
    return o, jnp.stack(h_new, axis=0)


if __name__ == "__main__":
    input_size = 16
    hidden_size = 32
    output_size = 16
    stack_size = 3
    batch = 2

    key = jax.random.PRNGKey(0)
    key_p, key_x = jax.random.split(key)
    params = init_stacked_rnn_params(key_p, input_size, hidden_size,
                                     output_size, stack_size)
    x = jax.random.normal(key_x, (batch, input_size), jnp.float32)

    # Pack once, then call the jitted kernel-backed forward.
    forward = make_stacked_rnn_forward(params, weight_dtype=jnp.float32)
    o, hn = forward(x)
    o = jax.block_until_ready(o)
    hn = jax.block_until_ready(hn)

    o_ref, hn_ref = reference_forward(params, x)
    assert o.shape == (batch, output_size)
    assert hn.shape == (stack_size, batch, hidden_size)
    assert jnp.allclose(o, o_ref, atol=1e-5, rtol=1e-5)
    assert jnp.allclose(hn, hn_ref, atol=1e-5, rtol=1e-5)

    print("KERNEL_OK")
</pallas_src>

<mosaic_0001>
module attributes {stable_mosaic.version = 11 : i64} {
  func.func @stacked_rnn_kernel(%arg0: memref<8x128xf32, #tpu.memory_space<vmem>>, %arg1: memref<3x8x128xf32, #tpu.memory_space<vmem>>, %arg2: memref<3x128x256xf32, #tpu.memory_space<vmem>>, %arg3: memref<3x128x256xf32, #tpu.memory_space<vmem>>, %arg4: memref<3x1x256xf32, #tpu.memory_space<vmem>>, %arg5: memref<8x128xf32, #tpu.memory_space<vmem>>, %arg6: memref<3x8x128xf32, #tpu.memory_space<vmem>>) attributes {dimension_semantics = [], scalar_prefetch = 0 : i64, scratch_operands = 0 : i64, tpu.core_type = #tpu.core_type<tc>} {
    %c0 = arith.constant 0 : index
    %c0_0 = arith.constant 0 : index
    %0 = vector.load %arg0[%c0, %c0_0] : memref<8x128xf32, #tpu.memory_space<vmem>>, vector<8x128xf32>
    %c0_1 = arith.constant 0 : index
    %c0_2 = arith.constant 0 : index
    %c0_3 = arith.constant 0 : index
    %1 = vector.load %arg2[%c0_1, %c0_2, %c0_3] : memref<3x128x256xf32, #tpu.memory_space<vmem>>, vector<1x128x256xf32>
    %2 = vector.shape_cast %1 : vector<1x128x256xf32> to vector<128x256xf32>
    %cst = arith.constant dense<0.000000e+00> : vector<8x256xf32>
    %3 = tpu.matmul %0, %2, %cst {dimension_numbers = #tpu.dot_dimension_numbers<[1], [0], [0], [1], [0, 0, 1, 1], [], []>} : vector<8x128xf32>, vector<128x256xf32>, vector<8x256xf32> -> vector<8x256xf32>
    %c0_4 = arith.constant 0 : index
    %c0_5 = arith.constant 0 : index
    %c0_6 = arith.constant 0 : index
    %4 = vector.load %arg1[%c0_4, %c0_5, %c0_6] : memref<3x8x128xf32, #tpu.memory_space<vmem>>, vector<1x8x128xf32>
    %5 = vector.shape_cast %4 : vector<1x8x128xf32> to vector<8x128xf32>
    %c0_7 = arith.constant 0 : index
    %c0_8 = arith.constant 0 : index
    %c0_9 = arith.constant 0 : index
    %6 = vector.load %arg3[%c0_7, %c0_8, %c0_9] : memref<3x128x256xf32, #tpu.memory_space<vmem>>, vector<1x128x256xf32>
    %7 = vector.shape_cast %6 : vector<1x128x256xf32> to vector<128x256xf32>
    %cst_10 = arith.constant dense<0.000000e+00> : vector<8x256xf32>
    %8 = tpu.matmul %5, %7, %cst_10 {dimension_numbers = #tpu.dot_dimension_numbers<[1], [0], [0], [1], [0, 0, 1, 1], [], []>} : vector<8x128xf32>, vector<128x256xf32>, vector<8x256xf32> -> vector<8x256xf32>
    %9 = arith.addf %3, %8 : vector<8x256xf32>
    %c0_11 = arith.constant 0 : index
    %c0_12 = arith.constant 0 : index
    %c0_13 = arith.constant 0 : index
    %10 = vector.load %arg4[%c0_11, %c0_12, %c0_13] : memref<3x1x256xf32, #tpu.memory_space<vmem>>, vector<1x1x256xf32>
    %11 = vector.shape_cast %10 : vector<1x1x256xf32> to vector<1x256xf32>
    %12 = vector.broadcast %11 : vector<1x256xf32> to vector<8x256xf32>
    %13 = arith.addf %9, %12 : vector<8x256xf32>
    %14 = vector.extract_strided_slice %13 {offsets = [0, 0], sizes = [8, 128], strides = [1, 1]} : vector<8x256xf32> to vector<8x128xf32>
    %15 = math.tanh %14 : vector<8x128xf32>
    %c0_14 = arith.constant 0 : index
    %c0_15 = arith.constant 0 : index
    %c0_16 = arith.constant 0 : index
    %16 = vector.load %arg6[%c0_14, %c0_15, %c0_16] : memref<3x8x128xf32, #tpu.memory_space<vmem>>, vector<1x8x128xf32>
    %17 = vector.shape_cast %16 : vector<1x8x128xf32> to vector<8x128xf32>
    %18 = vector.shape_cast %15 : vector<8x128xf32> to vector<1x8x128xf32>
    tpu.vector_store %arg6[%c0_14, %c0_15, %c0_16], %18 {strides = array<i32>} : memref<3x8x128xf32, #tpu.memory_space<vmem>>, vector<1x8x128xf32>,
    %19 = vector.extract_strided_slice %13 {offsets = [0, 128], sizes = [8, 128], strides = [1, 1]} : vector<8x256xf32> to vector<8x128xf32>
    %c1 = arith.constant 1 : index
    %c0_17 = arith.constant 0 : index
    %c0_18 = arith.constant 0 : index
    %20 = vector.load %arg2[%c1, %c0_17, %c0_18] : memref<3x128x256xf32, #tpu.memory_space<vmem>>, vector<1x128x256xf32>
    %21 = vector.shape_cast %20 : vector<1x128x256xf32> to vector<128x256xf32>
    %cst_19 = arith.constant dense<0.000000e+00> : vector<8x256xf32>
    %22 = tpu.matmul %19, %21, %cst_19 {dimension_numbers = #tpu.dot_dimension_numbers<[1], [0], [0], [1], [0, 0, 1, 1], [], []>} : vector<8x128xf32>, vector<128x256xf32>, vector<8x256xf32> -> vector<8x256xf32>
    %c1_20 = arith.constant 1 : index
    %c0_21 = arith.constant 0 : index
    %c0_22 = arith.constant 0 : index
    %23 = vector.load %arg1[%c1_20, %c0_21, %c0_22] : memref<3x8x128xf32, #tpu.memory_space<vmem>>, vector<1x8x128xf32>
    %24 = vector.shape_cast %23 : vector<1x8x128xf32> to vector<8x128xf32>
    %c1_23 = arith.constant 1 : index
    %c0_24 = arith.constant 0 : index
    %c0_25 = arith.constant 0 : index
    %25 = vector.load %arg3[%c1_23, %c0_24, %c0_25] : memref<3x128x256xf32, #tpu.memory_space<vmem>>, vector<1x128x256xf32>
    %26 = vector.shape_cast %25 : vector<1x128x256xf32> to vector<128x256xf32>
    %cst_26 = arith.constant dense<0.000000e+00> : vector<8x256xf32>
    %27 = tpu.matmul %24, %26, %cst_26 {dimension_numbers = #tpu.dot_dimension_numbers<[1], [0], [0], [1], [0, 0, 1, 1], [], []>} : vector<8x128xf32>, vector<128x256xf32>, vector<8x256xf32> -> vector<8x256xf32>
    %28 = arith.addf %22, %27 : vector<8x256xf32>
    %c1_27 = arith.constant 1 : index
    %c0_28 = arith.constant 0 : index
    %c0_29 = arith.constant 0 : index
    %29 = vector.load %arg4[%c1_27, %c0_28, %c0_29] : memref<3x1x256xf32, #tpu.memory_space<vmem>>, vector<1x1x256xf32>
    %30 = vector.shape_cast %29 : vector<1x1x256xf32> to vector<1x256xf32>
    %31 = vector.broadcast %30 : vector<1x256xf32> to vector<8x256xf32>
    %32 = arith.addf %28, %31 : vector<8x256xf32>
    %33 = vector.extract_strided_slice %32 {offsets = [0, 0], sizes = [8, 128], strides = [1, 1]} : vector<8x256xf32> to vector<8x128xf32>
    %34 = math.tanh %33 : vector<8x128xf32>
    %c1_30 = arith.constant 1 : index
    %c0_31 = arith.constant 0 : index
    %c0_32 = arith.constant 0 : index
    %35 = vector.load %arg6[%c1_30, %c0_31, %c0_32] : memref<3x8x128xf32, #tpu.memory_space<vmem>>, vector<1x8x128xf32>
    %36 = vector.shape_cast %35 : vector<1x8x128xf32> to vector<8x128xf32>
    %37 = vector.shape_cast %34 : vector<8x128xf32> to vector<1x8x128xf32>
    tpu.vector_store %arg6[%c1_30, %c0_31, %c0_32], %37 {strides = array<i32>} : memref<3x8x128xf32, #tpu.memory_space<vmem>>, vector<1x8x128xf32>,
    %38 = vector.extract_strided_slice %32 {offsets = [0, 128], sizes = [8, 128], strides = [1, 1]} : vector<8x256xf32> to vector<8x128xf32>
    %c2 = arith.constant 2 : index
    %c0_33 = arith.constant 0 : index
    %c0_34 = arith.constant 0 : index
    %39 = vector.load %arg2[%c2, %c0_33, %c0_34] : memref<3x128x256xf32, #tpu.memory_space<vmem>>, vector<1x128x256xf32>
    %40 = vector.shape_cast %39 : vector<1x128x256xf32> to vector<128x256xf32>
    %cst_35 = arith.constant dense<0.000000e+00> : vector<8x256xf32>
    %41 = tpu.matmul %38, %40, %cst_35 {dimension_numbers = #tpu.dot_dimension_numbers<[1], [0], [0], [1], [0, 0, 1, 1], [], []>} : vector<8x128xf32>, vector<128x256xf32>, vector<8x256xf32> -> vector<8x256xf32>
    %c2_36 = arith.constant 2 : index
    %c0_37 = arith.constant 0 : index
    %c0_38 = arith.constant 0 : index
    %42 = vector.load %arg1[%c2_36, %c0_37, %c0_38] : memref<3x8x128xf32, #tpu.memory_space<vmem>>, vector<1x8x128xf32>
    %43 = vector.shape_cast %42 : vector<1x8x128xf32> to vector<8x128xf32>
    %c2_39 = arith.constant 2 : index
    %c0_40 = arith.constant 0 : index
    %c0_41 = arith.constant 0 : index
    %44 = vector.load %arg3[%c2_39, %c0_40, %c0_41] : memref<3x128x256xf32, #tpu.memory_space<vmem>>, vector<1x128x256xf32>
    %45 = vector.shape_cast %44 : vector<1x128x256xf32> to vector<128x256xf32>
    %cst_42 = arith.constant dense<0.000000e+00> : vector<8x256xf32>
    %46 = tpu.matmul %43, %45, %cst_42 {dimension_numbers = #tpu.dot_dimension_numbers<[1], [0], [0], [1], [0, 0, 1, 1], [], []>} : vector<8x128xf32>, vector<128x256xf32>, vector<8x256xf32> -> vector<8x256xf32>
    %47 = arith.addf %41, %46 : vector<8x256xf32>
    %c2_43 = arith.constant 2 : index
    %c0_44 = arith.constant 0 : index
    %c0_45 = arith.constant 0 : index
    %48 = vector.load %arg4[%c2_43, %c0_44, %c0_45] : memref<3x1x256xf32, #tpu.memory_space<vmem>>, vector<1x1x256xf32>
    %49 = vector.shape_cast %48 : vector<1x1x256xf32> to vector<1x256xf32>
    %50 = vector.broadcast %49 : vector<1x256xf32> to vector<8x256xf32>
    %51 = arith.addf %47, %50 : vector<8x256xf32>
    %52 = vector.extract_strided_slice %51 {offsets = [0, 0], sizes = [8, 128], strides = [1, 1]} : vector<8x256xf32> to vector<8x128xf32>
    %53 = math.tanh %52 : vector<8x128xf32>
    %c2_46 = arith.constant 2 : index
    %c0_47 = arith.constant 0 : index
    %c0_48 = arith.constant 0 : index
    %54 = vector.load %arg6[%c2_46, %c0_47, %c0_48] : memref<3x8x128xf32, #tpu.memory_space<vmem>>, vector<1x8x128xf32>
    %55 = vector.shape_cast %54 : vector<1x8x128xf32> to vector<8x128xf32>
    %56 = vector.shape_cast %53 : vector<8x128xf32> to vector<1x8x128xf32>
    tpu.vector_store %arg6[%c2_46, %c0_47, %c0_48], %56 {strides = array<i32>} : memref<3x8x128xf32, #tpu.memory_space<vmem>>, vector<1x8x128xf32>,
    %57 = vector.extract_strided_slice %51 {offsets = [0, 128], sizes = [8, 128], strides = [1, 1]} : vector<8x256xf32> to vector<8x128xf32>
    %c0_49 = arith.constant 0 : index
    %c0_50 = arith.constant 0 : index
    %58 = vector.load %arg5[%c0_49, %c0_50] : memref<8x128xf32, #tpu.memory_space<vmem>>, vector<8x128xf32>
    tpu.vector_store %arg5[%c0_49, %c0_50], %57 {strides = array<i32>} : memref<8x128xf32, #tpu.memory_space<vmem>>, vector<8x128xf32>,
    return
  }
}

</mosaic_0001>

<llo_original>
// kernel: forward.1
$region0: #{forward.1}
  #allocation0 [shape = 'u32[]', space=smem, size = 0x4, offset = 0x4, fixed_abs, tag = 'smem constant byte address 0x4 - core index']
  #allocation1 [shape = 'u32[144,128]{1,0:T(1,128)}', space=vmem, size = 0x12000, scoped, tag = 'internal scratch']
  %s0 = inlined_call_operand.vmem [shape: f32[8,128], index: 0, kind: input, shape index: {}]
  %s1 = inlined_call_operand.vmem [shape: f32[3,8,128], index: 1, kind: input, shape index: {}]
  %s2 = inlined_call_operand.hbm [shape: f32[3,128,256], index: 2, kind: input, shape index: {}]
  %s3 = inlined_call_operand.hbm [shape: f32[3,128,256], index: 3, kind: input, shape index: {}]
  %s4 = inlined_call_operand.vmem [shape: f32[3,1,256], index: 4, kind: input, shape index: {}]
  %s5 = inlined_call_operand.vmem [shape: f32[8,128], index: 5, kind: output, shape index: {0}]
  %s6 = inlined_call_operand.vmem [shape: f32[3,8,128], index: 6, kind: output, shape index: {1}]
  %7 = xla_tuple %s5, %s6
  %s8 = sld [smem:[#allocation0]]
  $region46: #{forward.1} parent=0
    _
  %s10 = ssub.s32 1, %s8
  %s11 = scalar_select 0, %s10, %s8
  $region1: #{forward.1} parent=0
    #allocation2 [shape = 'u8[393216]{0}', space=vmem, size = 0x60000, scoped, tag = 'input window, operand 2, single buffered']
    #allocation3 [shape = 's32[1]{0}', space=sflag, size = 0x4, scoped, tag = 'scoped memory for forward.1']
    #allocation4 [shape = 'u8[393216]{0}', space=vmem, size = 0x60000, scoped, tag = 'input window, operand 3, single buffered']
    #allocation5 [shape = 's32[1]{0}', space=sflag, size = 0x4, scoped, tag = 'scoped memory for forward.1']
    %12 = vsyncpa [#allocation3], 0
    %13 = vsyncpa [#allocation5], 0
    // Predicated region
    $region2: #{forward.1} parent=1 // pred_check
      _
    $region3: #{forward.1} parent=1 // pred_check_branch
      %15 = sbr.rel (0) target = $region5
    $region4: #{forward.1} parent=1 // pred_region
      _
    $region5: #{forward.1} parent=1 // pred_fallthru
      _
    // Predicated region
    $region6: #{forward.1} parent=1 // pred_check
      _
    $region7: #{forward.1} parent=1 // pred_check_branch
      %17 = sbr.rel (0) target = $region9
    $region8: #{forward.1} parent=1 // pred_region
      _
    $region9: #{forward.1} parent=1 // pred_fallthru
      _
    // Predicated region
    $region10: #{forward.1} parent=1 // pred_check
      _
    $region11: #{forward.1} parent=1 // pred_check_branch
      %19 = sbr.rel (0) target = $region13
    $region12: #{forward.1} parent=1 // pred_region
      %s21 = ssub.s32 12288, 12288
      %22 = vsyncadd [#allocation3], %s21
      %s23 = sshll.u32 [#allocation2], 4
      %s24 = int_to_ptr.vmem [resolvable:$true] %s23
      %29 = dma.hbm_to_vmem [thread:$0]  %s2, 12288, %s24, [#allocation3], 256, 256, 16
    $region13: #{forward.1} parent=1 // pred_fallthru
      _
    // Predicated region
    $region14: #{forward.1} parent=1 // pred_check
      _
    $region15: #{forward.1} parent=1 // pred_check_branch
      %31 = sbr.rel (0) target = $region17
    $region16: #{forward.1} parent=1 // pred_region
      %s33 = ssub.s32 12288, 12288
      %34 = vsyncadd [#allocation5], %s33
      %s35 = sshll.u32 [#allocation4], 4
      %s36 = int_to_ptr.vmem [resolvable:$true] %s35
      %41 = dma.hbm_to_vmem [thread:$0]  %s3, 12288, %s36, [#allocation5], 256, 256, 16
    $region17: #{forward.1} parent=1 // pred_fallthru
      _
    // Predicated region
    $region18: #{forward.1} parent=1 // pred_check
      _
    $region19: #{forward.1} parent=1 // pred_check_branch
      %43 = sbr.rel (0) target = $region21
    $region20: #{forward.1} parent=1 // pred_region
      _
    $region21: #{forward.1} parent=1 // pred_fallthru
      _
    // Predicated region
    $region22: #{forward.1} parent=1 // pred_check
      _
    $region23: #{forward.1} parent=1 // pred_check_branch
      %45 = sbr.rel (0) target = $region25
    $region24: #{forward.1} parent=1 // pred_region
      %46 = dma.done [#allocation3], 12288
    $region25: #{forward.1} parent=1 // pred_fallthru
      _
    // Predicated region
    $region26: #{forward.1} parent=1 // pred_check
      _
    $region27: #{forward.1} parent=1 // pred_check_branch
      %48 = sbr.rel (0) target = $region29
    $region28: #{forward.1} parent=1 // pred_region
      %49 = dma.done [#allocation5], 12288
    $region29: #{forward.1} parent=1 // pred_fallthru
      _
    %v50 = vld [vmem:[%s0] sm:$0xff]
    %v51 = vld [vmem:[#allocation2] sm:$0xff]
    %v52 = vld [vmem:[#allocation2 + $0x8] sm:$0xff]
    %v53 = vld [vmem:[#allocation2 + $0x10] sm:$0xff]
    %v54 = vld [vmem:[#allocation2 + $0x18] sm:$0xff]
    %v55 = vld [vmem:[#allocation2 + $0x20] sm:$0xff]
    %v56 = vld [vmem:[#allocation2 + $0x28] sm:$0xff]
    %v57 = vld [vmem:[#allocation2 + $0x30] sm:$0xff]
    %v58 = vld [vmem:[#allocation2 + $0x38] sm:$0xff]
    %v59 = vld [vmem:[#allocation2 + $0x40] sm:$0xff]
    %v60 = vld [vmem:[#allocation2 + $0x48] sm:$0xff]
    %v61 = vld [vmem:[#allocation2 + $0x50] sm:$0xff]
    %v62 = vld [vmem:[#allocation2 + $0x58] sm:$0xff]
    %v63 = vld [vmem:[#allocation2 + $0x60] sm:$0xff]
    %v64 = vld [vmem:[#allocation2 + $0x68] sm:$0xff]
    %v65 = vld [vmem:[#allocation2 + $0x70] sm:$0xff]
    %v66 = vld [vmem:[#allocation2 + $0x78] sm:$0xff]
    %v67 = vld [vmem:[#allocation2 + $0x80] sm:$0xff]
    %v68 = vld [vmem:[#allocation2 + $0x88] sm:$0xff]
    %v69 = vld [vmem:[#allocation2 + $0x90] sm:$0xff]
    %v70 = vld [vmem:[#allocation2 + $0x98] sm:$0xff]
    %v71 = vld [vmem:[#allocation2 + $0xa0] sm:$0xff]
    %v72 = vld [vmem:[#allocation2 + $0xa8] sm:$0xff]
    %v73 = vld [vmem:[#allocation2 + $0xb0] sm:$0xff]
    %v74 = vld [vmem:[#allocation2 + $0xb8] sm:$0xff]
    %v75 = vld [vmem:[#allocation2 + $0xc0] sm:$0xff]
    %v76 = vld [vmem:[#allocation2 + $0xc8] sm:$0xff]
    %v77 = vld [vmem:[#allocation2 + $0xd0] sm:$0xff]
    %v78 = vld [vmem:[#allocation2 + $0xd8] sm:$0xff]
    %v79 = vld [vmem:[#allocation2 + $0xe0] sm:$0xff]
    %v80 = vld [vmem:[#allocation2 + $0xe8] sm:$0xff]
    %v81 = vld [vmem:[#allocation2 + $0xf0] sm:$0xff]
    %v82 = vld [vmem:[#allocation2 + $0xf8] sm:$0xff]
    %v83 = vld [vmem:[%s1] sm:$0xff]
    %v84 = vld [vmem:[#allocation4] sm:$0xff]
    %v85 = vld [vmem:[#allocation4 + $0x8] sm:$0xff]
    %v86 = vld [vmem:[#allocation4 + $0x10] sm:$0xff]
    %v87 = vld [vmem:[#allocation4 + $0x18] sm:$0xff]
    %v88 = vld [vmem:[#allocation4 + $0x20] sm:$0xff]
    %v89 = vld [vmem:[#allocation4 + $0x28] sm:$0xff]
    %v90 = vld [vmem:[#allocation4 + $0x30] sm:$0xff]
    %v91 = vld [vmem:[#allocation4 + $0x38] sm:$0xff]
    %v92 = vld [vmem:[#allocation4 + $0x40] sm:$0xff]
    %v93 = vld [vmem:[#allocation4 + $0x48] sm:$0xff]
    %v94 = vld [vmem:[#allocation4 + $0x50] sm:$0xff]
    %v95 = vld [vmem:[#allocation4 + $0x58] sm:$0xff]
    %v96 = vld [vmem:[#allocation4 + $0x60] sm:$0xff]
    %v97 = vld [vmem:[#allocation4 + $0x68] sm:$0xff]
    %v98 = vld [vmem:[#allocation4 + $0x70] sm:$0xff]
    %v99 = vld [vmem:[#allocation4 + $0x78] sm:$0xff]
    %v100 = vld [vmem:[#allocation4 + $0x80] sm:$0xff]
    %v101 = vld [vmem:[#allocation4 + $0x88] sm:$0xff]
    %v102 = vld [vmem:[#allocation4 + $0x90] sm:$0xff]
    %v103 = vld [vmem:[#allocation4 + $0x98] sm:$0xff]
    %v104 = vld [vmem:[#allocation4 + $0xa0] sm:$0xff]
    %v105 = vld [vmem:[#allocation4 + $0xa8] sm:$0xff]
    %v106 = vld [vmem:[#allocation4 + $0xb0] sm:$0xff]
    %v107 = vld [vmem:[#allocation4 + $0xb8] sm:$0xff]
    %v108 = vld [vmem:[#allocation4 + $0xc0] sm:$0xff]
    %v109 = vld [vmem:[#allocation4 + $0xc8] sm:$0xff]
    %v110 = vld [vmem:[#allocation4 + $0xd0] sm:$0xff]
    %v111 = vld [vmem:[#allocation4 + $0xd8] sm:$0xff]
    %v112 = vld [vmem:[#allocation4 + $0xe0] sm:$0xff]
    %v113 = vld [vmem:[#allocation4 + $0xe8] sm:$0xff]
    %v114 = vld [vmem:[#allocation4 + $0xf0] sm:$0xff]
    %v115 = vld [vmem:[#allocation4 + $0xf8] sm:$0xff]
    %116 = vmatprep.subr.mxu0 %v85
    %117 = vmatpush1.msra.mxu0 %v84
    %118 = vmatprep.subr.mxu0 %v87
    %119 = vmatpush1.msra.mxu0 %v86
    %120 = vmatprep.subr.mxu0 %v89
    %121 = vmatpush1.msra.mxu0 %v88
    %122 = vmatprep.subr.mxu0 %v91
    %123 = vmatpush1.msra.mxu0 %v90
    %124 = vmatprep.subr.mxu0 %v93
    %125 = vmatpush1.msra.mxu0 %v92
    %126 = vmatprep.subr.mxu0 %v95
    %127 = vmatpush1.msra.mxu0 %v94
    %128 = vmatprep.subr.mxu0 %v97
    %129 = vmatpush1.msra.mxu0 %v96
    %130 = vmatprep.subr.mxu0 %v99
    %131 = vmatpush1.msra.mxu0 %v98
    %132 = vmatprep.subr.mxu0 %v101
    %133 = vmatpush1.msra.mxu0 %v100
    %134 = vmatprep.subr.mxu0 %v103
    %135 = vmatpush1.msra.mxu0 %v102
    %136 = vmatprep.subr.mxu0 %v105
    %137 = vmatpush1.msra.mxu0 %v104
    %138 = vmatprep.subr.mxu0 %v107
    %139 = vmatpush1.msra.mxu0 %v106
    %140 = vmatprep.subr.mxu0 %v109
    %141 = vmatpush1.msra.mxu0 %v108
    %142 = vmatprep.subr.mxu0 %v111
    %143 = vmatpush1.msra.mxu0 %v110
    %144 = vmatprep.subr.mxu0 %v113
    %145 = vmatpush1.msra.mxu0 %v112
    %146 = vmatprep.subr.mxu0 %v115
    %147 = vmatpush1.msra.mxu0 %v114
    %148 = vmatprep.subr.mxu0 0.0
    %149 = vmatpush1.msra.mxu0 0.0
    %150 = vmatprep.subr.mxu0 0.0
    %151 = vmatpush1.msra.mxu0 0.0
    %152 = vmatprep.subr.mxu0 0.0
    %153 = vmatpush1.msra.mxu0 0.0
    %154 = vmatprep.subr.mxu0 0.0
    %155 = vmatpush1.msra.mxu0 0.0
    %156 = vmatprep.subr.mxu0 0.0
    %157 = vmatpush1.msra.mxu0 0.0
    %158 = vmatprep.subr.mxu0 0.0
    %159 = vmatpush1.msra.mxu0 0.0
    %160 = vmatprep.subr.mxu0 0.0
    %161 = vmatpush1.msra.mxu0 0.0
    %162 = vmatprep.subr.mxu0 0.0
    %163 = vmatpush1.msra.mxu0 0.0
    %164 = vmatprep.subr.mxu0 0.0
    %165 = vmatpush1.msra.mxu0 0.0
    %166 = vmatprep.subr.mxu0 0.0
    %167 = vmatpush1.msra.mxu0 0.0
    %168 = vmatprep.subr.mxu0 0.0
    %169 = vmatpush1.msra.mxu0 0.0
    %170 = vmatprep.subr.mxu0 0.0
    %171 = vmatpush1.msra.mxu0 0.0
    %172 = vmatprep.subr.mxu0 0.0
    %173 = vmatpush1.msra.mxu0 0.0
    %174 = vmatprep.subr.mxu0 0.0
    %175 = vmatpush1.msra.mxu0 0.0
    %176 = vmatprep.subr.mxu0 0.0
    %177 = vmatpush1.msra.mxu0 0.0
    %178 = vmatprep.subr.mxu0 0.0
    %179 = vmatpush1.msra.mxu0 0.0
    %180 = vmatprep.mubr.f32.mxu0 0.0
    %181 = vmatmul.mubr.f32.gmra.mrb[0].mxu0 %v83
    %v182 = vpop.f32.mrb[0].mxu0
    %v183 = vadd.f32 0.0, %v182
    %v184 = vpop.f32.mrb[0].mxu0
    %v185 = vadd.f32 0.0, %v184
    %186 = vdwg.mxu0
    %187 = vmatprep.subr.mxu0 %v52
    %188 = vmatpush1.msra.mxu0 %v51
    %189 = vmatprep.subr.mxu0 %v54
    %190 = vmatpush1.msra.mxu0 %v53
    %191 = vmatprep.subr.mxu0 %v56
    %192 = vmatpush1.msra.mxu0 %v55
    %193 = vmatprep.subr.mxu0 %v58
    %194 = vmatpush1.msra.mxu0 %v57
    %195 = vmatprep.subr.mxu0 %v60
    %196 = vmatpush1.msra.mxu0 %v59
    %197 = vmatprep.subr.mxu0 %v62
    %198 = vmatpush1.msra.mxu0 %v61
    %199 = vmatprep.subr.mxu0 %v64
    %200 = vmatpush1.msra.mxu0 %v63
    %201 = vmatprep.subr.mxu0 %v66
    %202 = vmatpush1.msra.mxu0 %v65
    %203 = vmatprep.subr.mxu0 %v68
    %204 = vmatpush1.msra.mxu0 %v67
    %205 = vmatprep.subr.mxu0 %v70
    %206 = vmatpush1.msra.mxu0 %v69
    %207 = vmatprep.subr.mxu0 %v72
    %208 = vmatpush1.msra.mxu0 %v71
    %209 = vmatprep.subr.mxu0 %v74
    %210 = vmatpush1.msra.mxu0 %v73
    %211 = vmatprep.subr.mxu0 %v76
    %212 = vmatpush1.msra.mxu0 %v75
    %213 = vmatprep.subr.mxu0 %v78
    %214 = vmatpush1.msra.mxu0 %v77
    %215 = vmatprep.subr.mxu0 %v80
    %216 = vmatpush1.msra.mxu0 %v79
    %217 = vmatprep.subr.mxu0 %v82
    %218 = vmatpush1.msra.mxu0 %v81
    %219 = vmatprep.subr.mxu0 0.0
    %220 = vmatpush1.msra.mxu0 0.0
    %221 = vmatprep.subr.mxu0 0.0
    %222 = vmatpush1.msra.mxu0 0.0
    %223 = vmatprep.subr.mxu0 0.0
    %224 = vmatpush1.msra.mxu0 0.0
    %225 = vmatprep.subr.mxu0 0.0
    %226 = vmatpush1.msra.mxu0 0.0
    %227 = vmatprep.subr.mxu0 0.0
    %228 = vmatpush1.msra.mxu0 0.0
    %229 = vmatprep.subr.mxu0 0.0
    %230 = vmatpush1.msra.mxu0 0.0
    %231 = vmatprep.subr.mxu0 0.0
    %232 = vmatpush1.msra.mxu0 0.0
    %233 = vmatprep.subr.mxu0 0.0
    %234 = vmatpush1.msra.mxu0 0.0
    %235 = vmatprep.subr.mxu0 0.0
    %236 = vmatpush1.msra.mxu0 0.0
    %237 = vmatprep.subr.mxu0 0.0
    %238 = vmatpush1.msra.mxu0 0.0
    %239 = vmatprep.subr.mxu0 0.0
    %240 = vmatpush1.msra.mxu0 0.0
    %241 = vmatprep.subr.mxu0 0.0
    %242 = vmatpush1.msra.mxu0 0.0
    %243 = vmatprep.subr.mxu0 0.0
    %244 = vmatpush1.msra.mxu0 0.0
    %245 = vmatprep.subr.mxu0 0.0
    %246 = vmatpush1.msra.mxu0 0.0
    %247 = vmatprep.subr.mxu0 0.0
    %248 = vmatpush1.msra.mxu0 0.0
    %249 = vmatprep.subr.mxu0 0.0
    %250 = vmatpush1.msra.mxu0 0.0
    %251 = vmatprep.mubr.f32.mxu0 0.0
    %252 = vmatmul.mubr.f32.gmra.mrb[0].mxu0 %v50
    %v253 = vpop.f32.mrb[0].mxu0
    %v254 = vadd.f32 %v183, %v253
    %v255 = vpop.f32.mrb[0].mxu0
    %v256 = vadd.f32 %v185, %v255
    %257 = vdwg.mxu0
    %v258 = vld [vmem:[%s4] sm:$0x3]
    %v260 = vlaneseq
    %v261 = vshrl.u32 %v260, 7
    %v262 = vsub.s32 0, %v261
    %v263 = vrot.slane %v258, %v262
    %v264 = vlaneseq
    %v265 = vshrl.u32 %v264, 7
    %v266 = vsub.s32 1, %v265
    %v267 = vrot.slane %v258, %v266
    %v270 = vadd.f32 %v254, %v263
    %v271 = vadd.f32 %v256, %v267
    %v272 = vtanh.pop %v270
    %273 = vst [vmem:[%s6] sm:$0xff] %v272
    %s274 = scalar_lea.vmem [#allocation2], 256
    %v275 = vld [vmem:[%s274] sm:$0xff]
    %v276 = vld [vmem:[%s274 + $0x8] sm:$0xff]
    %v277 = vld [vmem:[%s274 + $0x10] sm:$0xff]
    %v278 = vld [vmem:[%s274 + $0x18] sm:$0xff]
    %v279 = vld [vmem:[%s274 + $0x20] sm:$0xff]
    %v280 = vld [vmem:[%s274 + $0x28] sm:$0xff]
    %v281 = vld [vmem:[%s274 + $0x30] sm:$0xff]
    %v282 = vld [vmem:[%s274 + $0x38] sm:$0xff]
    %v283 = vld [vmem:[%s274 + $0x40] sm:$0xff]
    %v284 = vld [vmem:[%s274 + $0x48] sm:$0xff]
    %v285 = vld [vmem:[%s274 + $0x50] sm:$0xff]
    %v286 = vld [vmem:[%s274 + $0x58] sm:$0xff]
    %v287 = vld [vmem:[%s274 + $0x60] sm:$0xff]
    %v288 = vld [vmem:[%s274 + $0x68] sm:$0xff]
    %v289 = vld [vmem:[%s274 + $0x70] sm:$0xff]
    %v290 = vld [vmem:[%s274 + $0x78] sm:$0xff]
    %v291 = vld [vmem:[%s274 + $0x80] sm:$0xff]
    %v292 = vld [vmem:[%s274 + $0x88] sm:$0xff]
    %v293 = vld [vmem:[%s274 + $0x90] sm:$0xff]
    %v294 = vld [vmem:[%s274 + $0x98] sm:$0xff]
    %v295 = vld [vmem:[%s274 + $0xa0] sm:$0xff]
    %v296 = vld [vmem:[%s274 + $0xa8] sm:$0xff]
    %v297 = vld [vmem:[%s274 + $0xb0] sm:$0xff]
    %v298 = vld [vmem:[%s274 + $0xb8] sm:$0xff]
    %v299 = vld [vmem:[%s274 + $0xc0] sm:$0xff]
    %v300 = vld [vmem:[%s274 + $0xc8] sm:$0xff]
    %v301 = vld [vmem:[%s274 + $0xd0] sm:$0xff]
    %v302 = vld [vmem:[%s274 + $0xd8] sm:$0xff]
    %v303 = vld [vmem:[%s274 + $0xe0] sm:$0xff]
    %v304 = vld [vmem:[%s274 + $0xe8] sm:$0xff]
    %v305 = vld [vmem:[%s274 + $0xf0] sm:$0xff]
    %v306 = vld [vmem:[%s274 + $0xf8] sm:$0xff]
    %s307 = scalar_lea.vmem %s1, 8
    %v308 = vld [vmem:[%s307] sm:$0xff]
    %s309 = scalar_lea.vmem [#allocation4], 256
    %v310 = vld [vmem:[%s309] sm:$0xff]
    %v311 = vld [vmem:[%s309 + $0x8] sm:$0xff]
    %v312 = vld [vmem:[%s309 + $0x10] sm:$0xff]
    %v313 = vld [vmem:[%s309 + $0x18] sm:$0xff]
    %v314 = vld [vmem:[%s309 + $0x20] sm:$0xff]
    %v315 = vld [vmem:[%s309 + $0x28] sm:$0xff]
    %v316 = vld [vmem:[%s309 + $0x30] sm:$0xff]
    %v317 = vld [vmem:[%s309 + $0x38] sm:$0xff]
    %v318 = vld [vmem:[%s309 + $0x40] sm:$0xff]
    %v319 = vld [vmem:[%s309 + $0x48] sm:$0xff]
    %v320 = vld [vmem:[%s309 + $0x50] sm:$0xff]
    %v321 = vld [vmem:[%s309 + $0x58] sm:$0xff]
    %v322 = vld [vmem:[%s309 + $0x60] sm:$0xff]
    %v323 = vld [vmem:[%s309 + $0x68] sm:$0xff]
    %v324 = vld [vmem:[%s309 + $0x70] sm:$0xff]
    %v325 = vld [vmem:[%s309 + $0x78] sm:$0xff]
    %v326 = vld [vmem:[%s309 + $0x80] sm:$0xff]
    %v327 = vld [vmem:[%s309 + $0x88] sm:$0xff]
    %v328 = vld [vmem:[%s309 + $0x90] sm:$0xff]
    %v329 = vld [vmem:[%s309 + $0x98] sm:$0xff]
    %v330 = vld [vmem:[%s309 + $0xa0] sm:$0xff]
    %v331 = vld [vmem:[%s309 + $0xa8] sm:$0xff]
    %v332 = vld [vmem:[%s309 + $0xb0] sm:$0xff]
    %v333 = vld [vmem:[%s309 + $0xb8] sm:$0xff]
    %v334 = vld [vmem:[%s309 + $0xc0] sm:$0xff]
    %v335 = vld [vmem:[%s309 + $0xc8] sm:$0xff]
    %v336 = vld [vmem:[%s309 + $0xd0] sm:$0xff]
    %v337 = vld [vmem:[%s309 + $0xd8] sm:$0xff]
    %v338 = vld [vmem:[%s309 + $0xe0] sm:$0xff]
    %v339 = vld [vmem:[%s309 + $0xe8] sm:$0xff]
    %v340 = vld [vmem:[%s309 + $0xf0] sm:$0xff]
    %v341 = vld [vmem:[%s309 + $0xf8] sm:$0xff]
    %342 = vmatprep.subr.mxu0 %v311
    %343 = vmatpush1.msra.mxu0 %v310
    %344 = vmatprep.subr.mxu0 %v313
    %345 = vmatpush1.msra.mxu0 %v312
    %346 = vmatprep.subr.mxu0 %v315
    %347 = vmatpush1.msra.mxu0 %v314
    %348 = vmatprep.subr.mxu0 %v317
    %349 = vmatpush1.msra.mxu0 %v316
    %350 = vmatprep.subr.mxu0 %v319
    %351 = vmatpush1.msra.mxu0 %v318
    %352 = vmatprep.subr.mxu0 %v321
    %353 = vmatpush1.msra.mxu0 %v320
    %354 = vmatprep.subr.mxu0 %v323
    %355 = vmatpush1.msra.mxu0 %v322
    %356 = vmatprep.subr.mxu0 %v325
    %357 = vmatpush1.msra.mxu0 %v324
    %358 = vmatprep.subr.mxu0 %v327
    %359 = vmatpush1.msra.mxu0 %v326
    %360 = vmatprep.subr.mxu0 %v329
    %361 = vmatpush1.msra.mxu0 %v328
    %362 = vmatprep.subr.mxu0 %v331
    %363 = vmatpush1.msra.mxu0 %v330
    %364 = vmatprep.subr.mxu0 %v333
    %365 = vmatpush1.msra.mxu0 %v332
    %366 = vmatprep.subr.mxu0 %v335
    %367 = vmatpush1.msra.mxu0 %v334
    %368 = vmatprep.subr.mxu0 %v337
    %369 = vmatpush1.msra.mxu0 %v336
    %370 = vmatprep.subr.mxu0 %v339
    %371 = vmatpush1.msra.mxu0 %v338
    %372 = vmatprep.subr.mxu0 %v341
    %373 = vmatpush1.msra.mxu0 %v340
    %374 = vmatprep.subr.mxu0 0.0
    %375 = vmatpush1.msra.mxu0 0.0
    %376 = vmatprep.subr.mxu0 0.0
    %377 = vmatpush1.msra.mxu0 0.0
    %378 = vmatprep.subr.mxu0 0.0
    %379 = vmatpush1.msra.mxu0 0.0
    %380 = vmatprep.subr.mxu0 0.0
    %381 = vmatpush1.msra.mxu0 0.0
    %382 = vmatprep.subr.mxu0 0.0
    %383 = vmatpush1.msra.mxu0 0.0
    %384 = vmatprep.subr.mxu0 0.0
    %385 = vmatpush1.msra.mxu0 0.0
    %386 = vmatprep.subr.mxu0 0.0
    %387 = vmatpush1.msra.mxu0 0.0
    %388 = vmatprep.subr.mxu0 0.0
    %389 = vmatpush1.msra.mxu0 0.0
    %390 = vmatprep.subr.mxu0 0.0
    %391 = vmatpush1.msra.mxu0 0.0
    %392 = vmatprep.subr.mxu0 0.0
    %393 = vmatpush1.msra.mxu0 0.0
    %394 = vmatprep.subr.mxu0 0.0
    %395 = vmatpush1.msra.mxu0 0.0
    %396 = vmatprep.subr.mxu0 0.0
    %397 = vmatpush1.msra.mxu0 0.0
    %398 = vmatprep.subr.mxu0 0.0
    %399 = vmatpush1.msra.mxu0 0.0
    %400 = vmatprep.subr.mxu0 0.0
    %401 = vmatpush1.msra.mxu0 0.0
    %402 = vmatprep.subr.mxu0 0.0
    %403 = vmatpush1.msra.mxu0 0.0
    %404 = vmatprep.subr.mxu0 0.0
    %405 = vmatpush1.msra.mxu0 0.0
    %406 = vmatprep.mubr.f32.mxu0 0.0
    %407 = vmatmul.mubr.f32.gmra.mrb[0].mxu0 %v308
    %v408 = vpop.f32.mrb[0].mxu0
    %v409 = vadd.f32 0.0, %v408
    %v410 = vpop.f32.mrb[0].mxu0
    %v411 = vadd.f32 0.0, %v410
    %412 = vdwg.mxu0
    %413 = vmatprep.subr.mxu0 %v276
    %414 = vmatpush1.msra.mxu0 %v275
    %415 = vmatprep.subr.mxu0 %v278
    %416 = vmatpush1.msra.mxu0 %v277
    %417 = vmatprep.subr.mxu0 %v280
    %418 = vmatpush1.msra.mxu0 %v279
    %419 = vmatprep.subr.mxu0 %v282
    %420 = vmatpush1.msra.mxu0 %v281
    %421 = vmatprep.subr.mxu0 %v284
    %422 = vmatpush1.msra.mxu0 %v283
    %423 = vmatprep.subr.mxu0 %v286
    %424 = vmatpush1.msra.mxu0 %v285
    %425 = vmatprep.subr.mxu0 %v288
    %426 = vmatpush1.msra.mxu0 %v287
    %427 = vmatprep.subr.mxu0 %v290
    %428 = vmatpush1.msra.mxu0 %v289
    %429 = vmatprep.subr.mxu0 %v292
    %430 = vmatpush1.msra.mxu0 %v291
    %431 = vmatprep.subr.mxu0 %v294
    %432 = vmatpush1.msra.mxu0 %v293
    %433 = vmatprep.subr.mxu0 %v296
    %434 = vmatpush1.msra.mxu0 %v295
    %435 = vmatprep.subr.mxu0 %v298
    %436 = vmatpush1.msra.mxu0 %v297
    %437 = vmatprep.subr.mxu0 %v300
    %438 = vmatpush1.msra.mxu0 %v299
    %439 = vmatprep.subr.mxu0 %v302
    %440 = vmatpush1.msra.mxu0 %v301
    %441 = vmatprep.subr.mxu0 %v304
    %442 = vmatpush1.msra.mxu0 %v303
    %443 = vmatprep.subr.mxu0 %v306
    %444 = vmatpush1.msra.mxu0 %v305
    %445 = vmatprep.subr.mxu0 0.0
    %446 = vmatpush1.msra.mxu0 0.0
    %447 = vmatprep.subr.mxu0 0.0
    %448 = vmatpush1.msra.mxu0 0.0
    %449 = vmatprep.subr.mxu0 0.0
    %450 = vmatpush1.msra.mxu0 0.0
    %451 = vmatprep.subr.mxu0 0.0
    %452 = vmatpush1.msra.mxu0 0.0
    %453 = vmatprep.subr.mxu0 0.0
    %454 = vmatpush1.msra.mxu0 0.0
    %455 = vmatprep.subr.mxu0 0.0
    %456 = vmatpush1.msra.mxu0 0.0
    %457 = vmatprep.subr.mxu0 0.0
    %458 = vmatpush1.msra.mxu0 0.0
    %459 = vmatprep.subr.mxu0 0.0
    %460 = vmatpush1.msra.mxu0 0.0
    %461 = vmatprep.subr.mxu0 0.0
    %462 = vmatpush1.msra.mxu0 0.0
    %463 = vmatprep.subr.mxu0 0.0
    %464 = vmatpush1.msra.mxu0 0.0
    %465 = vmatprep.subr.mxu0 0.0
    %466 = vmatpush1.msra.mxu0 0.0
    %467 = vmatprep.subr.mxu0 0.0
    %468 = vmatpush1.msra.mxu0 0.0
    %469 = vmatprep.subr.mxu0 0.0
    %470 = vmatpush1.msra.mxu0 0.0
    %471 = vmatprep.subr.mxu0 0.0
    %472 = vmatpush1.msra.mxu0 0.0
    %473 = vmatprep.subr.mxu0 0.0
    %474 = vmatpush1.msra.mxu0 0.0
    %475 = vmatprep.subr.mxu0 0.0
    %476 = vmatpush1.msra.mxu0 0.0
    %477 = vmatprep.mubr.f32.mxu0 0.0
    %478 = vmatmul.mubr.f32.gmra.mrb[0].mxu0 %v271
    %v479 = vpop.f32.mrb[0].mxu0
    %v480 = vadd.f32 %v409, %v479
    %v481 = vpop.f32.mrb[0].mxu0
    %v482 = vadd.f32 %v411, %v481
    %483 = vdwg.mxu0
    %s484 = scalar_lea.vmem %s4, 2
    %v485 = vld [vmem:[%s484] sm:$0x3]
    %v487 = vlaneseq
    %v488 = vshrl.u32 %v487, 7
    %v489 = vsub.s32 0, %v488
    %v490 = vrot.slane %v485, %v489
    %v491 = vlaneseq
    %v492 = vshrl.u32 %v491, 7
    %v493 = vsub.s32 1, %v492
    %v494 = vrot.slane %v485, %v493
    %v497 = vadd.f32 %v480, %v490
    %v498 = vadd.f32 %v482, %v494
    %v499 = vtanh.pop %v497
    %s500 = scalar_lea.vmem %s6, 8
    %501 = vst [vmem:[%s500] sm:$0xff] %v499
    %s502 = scalar_lea.vmem [#allocation2], 512
    %v503 = vld [vmem:[%s502] sm:$0xff]
    %v504 = vld [vmem:[%s502 + $0x8] sm:$0xff]
    %v505 = vld [vmem:[%s502 + $0x10] sm:$0xff]
    %v506 = vld [vmem:[%s502 + $0x18] sm:$0xff]
    %v507 = vld [vmem:[%s502 + $0x20] sm:$0xff]
    %v508 = vld [vmem:[%s502 + $0x28] sm:$0xff]
    %v509 = vld [vmem:[%s502 + $0x30] sm:$0xff]
    %v510 = vld [vmem:[%s502 + $0x38] sm:$0xff]
    %v511 = vld [vmem:[%s502 + $0x40] sm:$0xff]
    %v512 = vld [vmem:[%s502 + $0x48] sm:$0xff]
    %v513 = vld [vmem:[%s502 + $0x50] sm:$0xff]
    %v514 = vld [vmem:[%s502 + $0x58] sm:$0xff]
    %v515 = vld [vmem:[%s502 + $0x60] sm:$0xff]
    %v516 = vld [vmem:[%s502 + $0x68] sm:$0xff]
    %v517 = vld [vmem:[%s502 + $0x70] sm:$0xff]
    %v518 = vld [vmem:[%s502 + $0x78] sm:$0xff]
    %v519 = vld [vmem:[%s502 + $0x80] sm:$0xff]
    %v520 = vld [vmem:[%s502 + $0x88] sm:$0xff]
    %v521 = vld [vmem:[%s502 + $0x90] sm:$0xff]
    %v522 = vld [vmem:[%s502 + $0x98] sm:$0xff]
    %v523 = vld [vmem:[%s502 + $0xa0] sm:$0xff]
    %v524 = vld [vmem:[%s502 + $0xa8] sm:$0xff]
    %v525 = vld [vmem:[%s502 + $0xb0] sm:$0xff]
    %v526 = vld [vmem:[%s502 + $0xb8] sm:$0xff]
    %v527 = vld [vmem:[%s502 + $0xc0] sm:$0xff]
    %v528 = vld [vmem:[%s502 + $0xc8] sm:$0xff]
    %v529 = vld [vmem:[%s502 + $0xd0] sm:$0xff]
    %v530 = vld [vmem:[%s502 + $0xd8] sm:$0xff]
    %v531 = vld [vmem:[%s502 + $0xe0] sm:$0xff]
    %v532 = vld [vmem:[%s502 + $0xe8] sm:$0xff]
    %v533 = vld [vmem:[%s502 + $0xf0] sm:$0xff]
    %v534 = vld [vmem:[%s502 + $0xf8] sm:$0xff]
    %s535 = scalar_lea.vmem %s1, 16
    %v536 = vld [vmem:[%s535] sm:$0xff]
    %s537 = scalar_lea.vmem [#allocation4], 512
    %v538 = vld [vmem:[%s537] sm:$0xff]
    %v539 = vld [vmem:[%s537 + $0x8] sm:$0xff]
    %v540 = vld [vmem:[%s537 + $0x10] sm:$0xff]
    %v541 = vld [vmem:[%s537 + $0x18] sm:$0xff]
    %v542 = vld [vmem:[%s537 + $0x20] sm:$0xff]
    %v543 = vld [vmem:[%s537 + $0x28] sm:$0xff]
    %v544 = vld [vmem:[%s537 + $0x30] sm:$0xff]
    %v545 = vld [vmem:[%s537 + $0x38] sm:$0xff]
    %v546 = vld [vmem:[%s537 + $0x40] sm:$0xff]
    %v547 = vld [vmem:[%s537 + $0x48] sm:$0xff]
    %v548 = vld [vmem:[%s537 + $0x50] sm:$0xff]
    %v549 = vld [vmem:[%s537 + $0x58] sm:$0xff]
    %v550 = vld [vmem:[%s537 + $0x60] sm:$0xff]
    %v551 = vld [vmem:[%s537 + $0x68] sm:$0xff]
    %v552 = vld [vmem:[%s537 + $0x70] sm:$0xff]
    %v553 = vld [vmem:[%s537 + $0x78] sm:$0xff]
    %v554 = vld [vmem:[%s537 + $0x80] sm:$0xff]
    %v555 = vld [vmem:[%s537 + $0x88] sm:$0xff]
    %v556 = vld [vmem:[%s537 + $0x90] sm:$0xff]
    %v557 = vld [vmem:[%s537 + $0x98] sm:$0xff]
    %v558 = vld [vmem:[%s537 + $0xa0] sm:$0xff]
    %v559 = vld [vmem:[%s537 + $0xa8] sm:$0xff]
    %v560 = vld [vmem:[%s537 + $0xb0] sm:$0xff]
    %v561 = vld [vmem:[%s537 + $0xb8] sm:$0xff]
    %v562 = vld [vmem:[%s537 + $0xc0] sm:$0xff]
    %v563 = vld [vmem:[%s537 + $0xc8] sm:$0xff]
    %v564 = vld [vmem:[%s537 + $0xd0] sm:$0xff]
    %v565 = vld [vmem:[%s537 + $0xd8] sm:$0xff]
    %v566 = vld [vmem:[%s537 + $0xe0] sm:$0xff]
    %v567 = vld [vmem:[%s537 + $0xe8] sm:$0xff]
    %v568 = vld [vmem:[%s537 + $0xf0] sm:$0xff]
    %v569 = vld [vmem:[%s537 + $0xf8] sm:$0xff]
    %570 = vmatprep.subr.mxu0 %v539
    %571 = vmatpush1.msra.mxu0 %v538
    %572 = vmatprep.subr.mxu0 %v541
    %573 = vmatpush1.msra.mxu0 %v540
    %574 = vmatprep.subr.mxu0 %v543
    %575 = vmatpush1.msra.mxu0 %v542
    %576 = vmatprep.subr.mxu0 %v545
    %577 = vmatpush1.msra.mxu0 %v544
    %578 = vmatprep.subr.mxu0 %v547
    %579 = vmatpush1.msra.mxu0 %v546
    %580 = vmatprep.subr.mxu0 %v549
    %581 = vmatpush1.msra.mxu0 %v548
    %582 = vmatprep.subr.mxu0 %v551
    %583 = vmatpush1.msra.mxu0 %v550
    %584 = vmatprep.subr.mxu0 %v553
    %585 = vmatpush1.msra.mxu0 %v552
    %586 = vmatprep.subr.mxu0 %v555
    %587 = vmatpush1.msra.mxu0 %v554
    %588 = vmatprep.subr.mxu0 %v557
    %589 = vmatpush1.msra.mxu0 %v556
    %590 = vmatprep.subr.mxu0 %v559
    %591 = vmatpush1.msra.mxu0 %v558
    %592 = vmatprep.subr.mxu0 %v561
    %593 = vmatpush1.msra.mxu0 %v560
    %594 = vmatprep.subr.mxu0 %v563
    %595 = vmatpush1.msra.mxu0 %v562
    %596 = vmatprep.subr.mxu0 %v565
    %597 = vmatpush1.msra.mxu0 %v564
    %598 = vmatprep.subr.mxu0 %v567
    %599 = vmatpush1.msra.mxu0 %v566
    %600 = vmatprep.subr.mxu0 %v569
    %601 = vmatpush1.msra.mxu0 %v568
    %602 = vmatprep.subr.mxu0 0.0
    %603 = vmatpush1.msra.mxu0 0.0
    %604 = vmatprep.subr.mxu0 0.0
    %605 = vmatpush1.msra.mxu0 0.0
    %606 = vmatprep.subr.mxu0 0.0
    %607 = vmatpush1.msra.mxu0 0.0
    %608 = vmatprep.subr.mxu0 0.0
    %609 = vmatpush1.msra.mxu0 0.0
    %610 = vmatprep.subr.mxu0 0.0
    %611 = vmatpush1.msra.mxu0 0.0
    %612 = vmatprep.subr.mxu0 0.0
    %613 = vmatpush1.msra.mxu0 0.0
    %614 = vmatprep.subr.mxu0 0.0
    %615 = vmatpush1.msra.mxu0 0.0
    %616 = vmatprep.subr.mxu0 0.0
    %617 = vmatpush1.msra.mxu0 0.0
    %618 = vmatprep.subr.mxu0 0.0
    %619 = vmatpush1.msra.mxu0 0.0
    %620 = vmatprep.subr.mxu0 0.0
    %621 = vmatpush1.msra.mxu0 0.0
    %622 = vmatprep.subr.mxu0 0.0
    %623 = vmatpush1.msra.mxu0 0.0
    %624 = vmatprep.subr.mxu0 0.0
    %625 = vmatpush1.msra.mxu0 0.0
    %626 = vmatprep.subr.mxu0 0.0
    %627 = vmatpush1.msra.mxu0 0.0
    %628 = vmatprep.subr.mxu0 0.0
    %629 = vmatpush1.msra.mxu0 0.0
    %630 = vmatprep.subr.mxu0 0.0
    %631 = vmatpush1.msra.mxu0 0.0
    %632 = vmatprep.subr.mxu0 0.0
    %633 = vmatpush1.msra.mxu0 0.0
    %634 = vmatprep.mubr.f32.mxu0 0.0
    %635 = vmatmul.mubr.f32.gmra.mrb[0].mxu0 %v536
    %v636 = vpop.f32.mrb[0].mxu0
    %v637 = vadd.f32 0.0, %v636
    %v638 = vpop.f32.mrb[0].mxu0
    %v639 = vadd.f32 0.0, %v638
    %640 = vdwg.mxu0
    %641 = vmatprep.subr.mxu0 %v504
    %642 = vmatpush1.msra.mxu0 %v503
    %643 = vmatprep.subr.mxu0 %v506
    %644 = vmatpush1.msra.mxu0 %v505
    %645 = vmatprep.subr.mxu0 %v508
    %646 = vmatpush1.msra.mxu0 %v507
    %647 = vmatprep.subr.mxu0 %v510
    %648 = vmatpush1.msra.mxu0 %v509
    %649 = vmatprep.subr.mxu0 %v512
    %650 = vmatpush1.msra.mxu0 %v511
    %651 = vmatprep.subr.mxu0 %v514
    %652 = vmatpush1.msra.mxu0 %v513
    %653 = vmatprep.subr.mxu0 %v516
    %654 = vmatpush1.msra.mxu0 %v515
    %655 = vmatprep.subr.mxu0 %v518
    %656 = vmatpush1.msra.mxu0 %v517
    %657 = vmatprep.subr.mxu0 %v520
    %658 = vmatpush1.msra.mxu0 %v519
    %659 = vmatprep.subr.mxu0 %v522
    %660 = vmatpush1.msra.mxu0 %v521
    %661 = vmatprep.subr.mxu0 %v524
    %662 = vmatpush1.msra.mxu0 %v523
    %663 = vmatprep.subr.mxu0 %v526
    %664 = vmatpush1.msra.mxu0 %v525
    %665 = vmatprep.subr.mxu0 %v528
    %666 = vmatpush1.msra.mxu0 %v527
    %667 = vmatprep.subr.mxu0 %v530
    %668 = vmatpush1.msra.mxu0 %v529
    %669 = vmatprep.subr.mxu0 %v532
    %670 = vmatpush1.msra.mxu0 %v531
    %671 = vmatprep.subr.mxu0 %v534
    %672 = vmatpush1.msra.mxu0 %v533
    %673 = vmatprep.subr.mxu0 0.0
    %674 = vmatpush1.msra.mxu0 0.0
    %675 = vmatprep.subr.mxu0 0.0
    %676 = vmatpush1.msra.mxu0 0.0
    %677 = vmatprep.subr.mxu0 0.0
    %678 = vmatpush1.msra.mxu0 0.0
    %679 = vmatprep.subr.mxu0 0.0
    %680 = vmatpush1.msra.mxu0 0.0
    %681 = vmatprep.subr.mxu0 0.0
    %682 = vmatpush1.msra.mxu0 0.0
    %683 = vmatprep.subr.mxu0 0.0
    %684 = vmatpush1.msra.mxu0 0.0
    %685 = vmatprep.subr.mxu0 0.0
    %686 = vmatpush1.msra.mxu0 0.0
    %687 = vmatprep.subr.mxu0 0.0
    %688 = vmatpush1.msra.mxu0 0.0
    %689 = vmatprep.subr.mxu0 0.0
    %690 = vmatpush1.msra.mxu0 0.0
    %691 = vmatprep.subr.mxu0 0.0
    %692 = vmatpush1.msra.mxu0 0.0
    %693 = vmatprep.subr.mxu0 0.0
    %694 = vmatpush1.msra.mxu0 0.0
    %695 = vmatprep.subr.mxu0 0.0
    %696 = vmatpush1.msra.mxu0 0.0
    %697 = vmatprep.subr.mxu0 0.0
    %698 = vmatpush1.msra.mxu0 0.0
    %699 = vmatprep.subr.mxu0 0.0
    %700 = vmatpush1.msra.mxu0 0.0
    %701 = vmatprep.subr.mxu0 0.0
    %702 = vmatpush1.msra.mxu0 0.0
    %703 = vmatprep.subr.mxu0 0.0
    %704 = vmatpush1.msra.mxu0 0.0
    %705 = vmatprep.mubr.f32.mxu0 0.0
    %706 = vmatmul.mubr.f32.gmra.mrb[0].mxu0 %v498
    %v707 = vpop.f32.mrb[0].mxu0
    %v708 = vadd.f32 %v637, %v707
    %v709 = vpop.f32.mrb[0].mxu0
    %v710 = vadd.f32 %v639, %v709
    %711 = vdwg.mxu0
    %s712 = scalar_lea.vmem %s4, 4
    %v713 = vld [vmem:[%s712] sm:$0x3]
    %v715 = vlaneseq
    %v716 = vshrl.u32 %v715, 7
    %v717 = vsub.s32 0, %v716
    %v718 = vrot.slane %v713, %v717
    %v719 = vlaneseq
    %v720 = vshrl.u32 %v719, 7
    %v721 = vsub.s32 1, %v720
    %v722 = vrot.slane %v713, %v721
    %v725 = vadd.f32 %v708, %v718
    %v726 = vadd.f32 %v710, %v722
    %v727 = vtanh.pop %v725
    %s728 = scalar_lea.vmem %s6, 16
    %729 = vst [vmem:[%s728] sm:$0xff] %v727
    %730 = vst [vmem:[%s5] sm:$0xff] %v726
    // Predicated region
    $region30: #{forward.1} parent=1 // pred_check
      _
    $region31: #{forward.1} parent=1 // pred_check_branch
      %732 = sbr.rel (0) target = $region33
    $region32: #{forward.1} parent=1 // pred_region
      _
    $region33: #{forward.1} parent=1 // pred_fallthru
      _
    // Predicated region
    $region34: #{forward.1} parent=1 // pred_check
      _
    $region35: #{forward.1} parent=1 // pred_check_branch
      %734 = sbr.rel (0) target = $region37
    $region36: #{forward.1} parent=1 // pred_region
      _
    $region37: #{forward.1} parent=1 // pred_fallthru
      _
    // Predicated region
    $region38: #{forward.1} parent=1 // pred_check
      _
    $region39: #{forward.1} parent=1 // pred_check_branch
      %736 = sbr.rel (0) target = $region41
    $region40: #{forward.1} parent=1 // pred_region
      _
    $region41: #{forward.1} parent=1 // pred_fallthru
      _
    // Predicated region
    $region42: #{forward.1} parent=1 // pred_check
      _
    $region43: #{forward.1} parent=1 // pred_check_branch
      %738 = sbr.rel (0) target = $region45
    $region44: #{forward.1} parent=1 // pred_region
      _
    $region45: #{forward.1} parent=1 // pred_fallthru
      _
    %739 = vsyncpa [#allocation3], 1
    %740 = vsyncpa [#allocation5], 1

</llo_original>
